<compile_context>
chip_gen: v5e
topology: v5e:2x2
jax: 0.10.0
libtpu: 0.0.40
codegen_flags: <defaults>
</compile_context>

<pallas_src>
import functools

import jax
import jax.numpy as jnp
from jax.experimental import pallas as pl
from jax.experimental.pallas import tpu as pltpu


# ------------------------------ Pallas kernel -------------------------------

def _shadow_kernel(x_ref, w1_ref, w2_ref, wf_ref, c_ref, bf_ref, o_ref, *, eps):
    """Fused conv1 -> MixedNorm -> relu -> conv2 -> relu -> fc for one batch block.

    x_ref : (Bblk, wa, 4*C*4)  im2col rows (oh2, ow2); cols (kh2, kw2, c, kh1, kw1)
    w1    : (4*C*4, 48)        block-diagonal conv1 weight (output cols ordered (p, ci))
    w2    : (48, 48)           conv2 weight flattened over (p, ci)
    wf    : (48, hidden)       fc weight
    c     : (6, 48)            [b1_48, b2, IN_gamma|0, IN_beta|0, 0|BN_scale, 0|BN_shift]
    bf    : (1, hidden)        fc bias
    o_ref : (Bblk, wa, hidden)
    """
    bblk, wa, kdim = x_ref.shape
    hidden = o_ref.shape[-1]
    c = c_ref[...]                                               # (6, 48)

    # ---- conv1 (2x2/s2): one matmul; block-diag weight yields all 4 conv2 kernel
    # offsets at once, columns ordered (p, ci). ------------------------------
    x2 = x_ref[...].reshape(bblk * wa, kdim)
    y = jnp.dot(x2, w1_ref[...], preferred_element_type=jnp.float32) + c[0:1, :]
    y3 = y.reshape(bblk, wa, 48)                                 # (Bblk, wa, 48)

    # ---- MixedNorm folded to one per-(sample, channel) scale/shift ----------
    # Per-sample stats over all 4*wa conv1 positions: mean over rows, then over
    # the four kernel-offset column groups (tiny (Bblk, 48) vectors).
    m48 = jnp.mean(y3, axis=1)                                   # (Bblk, 48)
    q48 = jnp.mean(y3 * y3, axis=1)                              # (Bblk, 48) second moment

    def pavg(v):                                                 # combine the 4 p-groups / channel
        v12 = 0.25 * (v[:, 0:12] + v[:, 12:24] + v[:, 24:36] + v[:, 36:48])
        return jnp.tile(v12, (1, 4))                             # back to (p, ci) column order

    m = pavg(m48)
    var = jnp.maximum(pavg(q48) - m * m, 0.0)                    # biased variance
    gr = c[2:3, :] * jax.lax.rsqrt(var + eps)                    # IN gamma * rstd (0 on BN ch)
    s = gr + c[4:5, :]                                           # + folded BN scale (0 on IN ch)
    t = c[3:4, :] - m * gr + c[5:6, :]                           # IN shift / folded BN shift
    y3 = jnp.maximum(y3 * s[:, None, :] + t[:, None, :], 0.0)    # norm + relu in one pass

    # ---- conv2 (2x2/s2): ONE matmul over the (p, ci)-ordered 48 columns -----
    y2 = jnp.dot(y3.reshape(bblk * wa, 48), w2_ref[...],
                 preferred_element_type=jnp.float32)
    y2 = jnp.maximum(y2 + c[1:2, :], 0.0)                        # (Bblk*wa, 48)

    # ---- fc ------------------------------------------------------------------
    out = jnp.dot(y2, wf_ref[...], preferred_element_type=jnp.float32) + bf_ref[...]
    o_ref[...] = out.reshape(bblk, wa, hidden).astype(o_ref.dtype)


# ------------------------------ JAX wrapper ---------------------------------

def shadow_feature_extraction(x, params, *, b_block=None, side_info=False,
                              view_index=None, side_info_coeff=1.5, eps=1e-5):
    """x: (B, C, H, W) NCHW  ->  (B, hidden, H//4, W//4) NCHW."""
    B, C, H, W = x.shape
    assert H % 4 == 0 and W % 4 == 0
    OH, OW = H // 4, W // 4            # conv2 output spatial
    wa = OH * OW                       # output positions per sample
    C4 = C * 4
    hidden = params['wf'].shape[1]

    if b_block is None:
        # Amortize the fixed per-grid-step cost over several samples, but keep >=2 grid
        # steps when B allows so both v7x TensorCores get work on the parallel axis.
        b_block = min(8, B) if B < 4 else min(8, max(1, B // 2))
    nblk = pl.cdiv(B, b_block)
    B_pad = nblk * b_block

    # conv1 im2col: rows = conv2-output raster (oh2, ow2), cols = (kh2, kw2, c, kh1, kw1).
    xp = x.reshape(B, C, OH, 2, 2, OW, 2, 2)        # (b, c, oh2, kh2, kh1, ow2, kw2, kw1)
    xp = xp.transpose(0, 2, 5, 3, 6, 1, 4, 7)       # (b, oh2, ow2, kh2, kw2, c, kh1, kw1)
    xp = xp.reshape(B, wa, 4 * C4)
    if B_pad != B:
        xp = jnp.pad(xp, ((0, B_pad - B), (0, 0), (0, 0)))
    # TODO(synk): this 8-D transpose is a one-off XLA HBM relayout of x; for very large
    # images it could move in-kernel as strided gathers instead.

    # Block-diagonal conv1 weight: kron(I4, w1) -> (4*C4, 48), output cols (p, ci).
    w1blk = jnp.kron(jnp.eye(4, dtype=jnp.float32), params['w1'])
    w2flat = params['w2'].reshape(48, 48)           # rows ordered (p*12 + ci)

    # Pack per-channel constants into one (6, 48) input, pre-tiled to (p, ci) order and
    # pre-masked for the InstanceNorm (ch 0:6) / eval-BatchNorm (ch 6:12) split.
    bn_scale = params['bn_g'] * jax.lax.rsqrt(params['bn_rv'] + eps)
    bn_shift = params['bn_b'] - params['bn_rm'] * bn_scale
    z6 = jnp.zeros((6,), jnp.float32)
    c48 = jnp.stack([
        jnp.tile(params['b1'], 4),                              # conv1 bias (tiled over p)
        params['b2'],                                           # conv2 bias
        jnp.tile(jnp.concatenate([params['in_g'], z6]), 4),     # IN gamma (0 on BN ch)
        jnp.tile(jnp.concatenate([params['in_b'], z6]), 4),     # IN beta  (0 on BN ch)
        jnp.tile(jnp.concatenate([z6, bn_scale]), 4),           # folded BN scale (0 on IN ch)
        jnp.tile(jnp.concatenate([z6, bn_shift]), 4),           # folded BN shift (0 on IN ch)
    ])

    out = pl.pallas_call(
        functools.partial(_shadow_kernel, eps=eps),
        out_shape=jax.ShapeDtypeStruct((B_pad, wa, hidden), jnp.float32),
        grid=(nblk,),
        in_specs=[
            pl.BlockSpec((b_block, wa, 4 * C4), lambda i: (i, 0, 0)),  # batch-blocked im2col
            pl.BlockSpec((4 * C4, 48), lambda i: (0, 0)),              # conv1 weight (resident)
            pl.BlockSpec((48, 48), lambda i: (0, 0)),                  # conv2 weight (resident)
            pl.BlockSpec((48, hidden), lambda i: (0, 0)),              # fc weight    (resident)
            pl.BlockSpec((6, 48), lambda i: (0, 0)),                   # packed per-ch constants
            pl.BlockSpec((1, hidden), lambda i: (0, 0)),               # fc bias
        ],
        out_specs=pl.BlockSpec((b_block, wa, hidden), lambda i: (i, 0, 0)),
        compiler_params=pltpu.CompilerParams(dimension_semantics=("parallel",)),
        # NOTE: for large b_block / image sizes on v7x (64 MiB VMEM) set vmem_limit_bytes
        # explicitly and shrink b_block; at these block sizes the defaults are ample.
    )(xp, w1blk, w2flat, params['wf'], c48, params['bf'].reshape(1, hidden))

    y = out[:B].reshape(B, OH, OW, hidden)
    if side_info and view_index is not None:
        # side_info_embedding[view_index] add: trivial indexed add, kept in JAX glue.
        y = y + side_info_coeff * params['side_emb'][view_index]
    return y.transpose(0, 3, 1, 2)


# --------------------------- pure-JAX reference ------------------------------

def shadow_reference(x, params, eps=1e-5):
    C = x.shape[1]
    w1_t = params['w1'].T.reshape(12, C, 2, 2)
    y = jax.lax.conv_general_dilated(x, w1_t, (2, 2), 'VALID',
                                     dimension_numbers=('NCHW', 'OIHW', 'NCHW'))
    y = y + params['b1'][None, :, None, None]
    a, b = y[:, :6], y[:, 6:]
    m = jnp.mean(a, axis=(2, 3), keepdims=True)
    v = jnp.mean(jnp.square(a - m), axis=(2, 3), keepdims=True)
    a = (a - m) * jax.lax.rsqrt(v + eps) * params['in_g'][None, :, None, None] \
        + params['in_b'][None, :, None, None]
    b = (b - params['bn_rm'][None, :, None, None]) \
        * jax.lax.rsqrt(params['bn_rv'][None, :, None, None] + eps) \
        * params['bn_g'][None, :, None, None] + params['bn_b'][None, :, None, None]
    y = jax.nn.relu(jnp.concatenate([a, b], axis=1))
    w2_t = params['w2'].reshape(2, 2, 12, 48).transpose(3, 2, 0, 1)
    y = jax.lax.conv_general_dilated(y, w2_t, (2, 2), 'VALID',
                                     dimension_numbers=('NCHW', 'OIHW', 'NCHW'))
    y = jax.nn.relu(y + params['b2'][None, :, None, None])
    y = y.transpose(0, 2, 3, 1) @ params['wf'] + params['bf']
    return y.transpose(0, 3, 1, 2)


# ------------------------------ parameter init -------------------------------

def init_params(key, *, in_channels, hidden):
    ks = jax.random.split(key, 12)
    n = lambda k, shape, std=0.1: jax.random.normal(k, shape, jnp.float32) * std
    C4 = in_channels * 4
    return {
        # conv1: rows ordered (c, kh, kw)  <->  torch conv1.weight.reshape(12, C*4).T
        'w1': n(ks[0], (C4, 12), 0.2),
        'b1': n(ks[1], (12,), 0.1),
        # MixedNorm: InstanceNorm2d(6, affine) + BatchNorm2d(6) eval running stats
        'in_g': 1.0 + n(ks[2], (6,), 0.1),
        'in_b': n(ks[3], (6,), 0.1),
        'bn_g': 1.0 + n(ks[4], (6,), 0.1),
        'bn_b': n(ks[5], (6,), 0.1),
        'bn_rm': n(ks[6], (6,), 0.1),
        'bn_rv': jax.random.uniform(ks[7], (6,), jnp.float32, 0.5, 1.5),
        # conv2: w2[kh*2+kw, c_in, c_out]  <->  torch conv2.weight.permute(2,3,1,0)
        'w2': n(ks[8], (4, 12, 48), 0.15),
        'b2': n(ks[9], (48,), 0.1),
        # fc: (48, hidden) = torch fc.weight.T
        'wf': n(ks[10], (48, hidden), 0.15),
        'bf': n(ks[11], (hidden,), 0.1),
    }


# ----------------------------------- main ------------------------------------

if __name__ == "__main__":
    # ShadowFeatureExtraction(in_chan=4, hidden_dimension=32)  (defaults: camera=0,
    # sequence=0, side_info=False -> no side-info embedding used)
    B, C, H, W = 2, 4, 16, 16
    HIDDEN = 32

    key = jax.random.PRNGKey(0)
    kx, kp = jax.random.split(key)
    x = jax.random.normal(kx, (B, C, H, W), jnp.float32)
    params = init_params(kp, in_channels=C, hidden=HIDDEN)

    fwd = jax.jit(shadow_feature_extraction)
    out = jax.block_until_ready(fwd(x, params))

    assert out.shape == (B, HIDDEN, H // 4, W // 4), out.shape
    assert bool(jnp.all(jnp.isfinite(out)))

    ref = jax.block_until_ready(shadow_reference(x, params))
    err = float(jnp.max(jnp.abs(out - ref)))
    assert err < 1e-3, f"mismatch vs reference: {err}"

    print("KERNEL_OK")
</pallas_src>

<mosaic_0001>
module attributes {stable_mosaic.version = 11 : i64} {
  func.func @_shadow_kernel(%arg0: i32, %arg1: memref<2x16x64xf32, #tpu.memory_space<vmem>>, %arg2: memref<64x48xf32, #tpu.memory_space<vmem>>, %arg3: memref<48x48xf32, #tpu.memory_space<vmem>>, %arg4: memref<48x32xf32, #tpu.memory_space<vmem>>, %arg5: memref<6x48xf32, #tpu.memory_space<vmem>>, %arg6: memref<1x32xf32, #tpu.memory_space<vmem>>, %arg7: memref<2x16x32xf32, #tpu.memory_space<vmem>>) attributes {dimension_semantics = [#tpu.dimension_semantics<parallel>], iteration_bounds = array<i64: 1>, scalar_prefetch = 0 : i64, scratch_operands = 0 : i64, tpu.core_type = #tpu.core_type<tc>, window_params = [{transform_indices = @transform_0, window_bounds = array<i64: 2, 16, 64>}, {pipeline_mode = #tpu.pipeline_mode<synchronous>, transform_indices = @transform_1, window_bounds = array<i64: 64, 48>}, {pipeline_mode = #tpu.pipeline_mode<synchronous>, transform_indices = @transform_2, window_bounds = array<i64: 48, 48>}, {pipeline_mode = #tpu.pipeline_mode<synchronous>, transform_indices = @transform_3, window_bounds = array<i64: 48, 32>}, {pipeline_mode = #tpu.pipeline_mode<synchronous>, transform_indices = @transform_4, window_bounds = array<i64: 6, 48>}, {pipeline_mode = #tpu.pipeline_mode<synchronous>, transform_indices = @transform_5, window_bounds = array<i64: 1, 32>}, {transform_indices = @transform_6, window_bounds = array<i64: 2, 16, 32>}]} {
    %c0 = arith.constant 0 : index
    %c0_0 = arith.constant 0 : index
    %0 = vector.load %arg5[%c0, %c0_0] : memref<6x48xf32, #tpu.memory_space<vmem>>, vector<6x48xf32>
    %c0_1 = arith.constant 0 : index
    %c0_2 = arith.constant 0 : index
    %c0_3 = arith.constant 0 : index
    %1 = vector.load %arg1[%c0_1, %c0_2, %c0_3] : memref<2x16x64xf32, #tpu.memory_space<vmem>>, vector<2x16x64xf32>
    %2 = vector.shape_cast %1 : vector<2x16x64xf32> to vector<32x64xf32>
    %c0_4 = arith.constant 0 : index
    %c0_5 = arith.constant 0 : index
    %3 = vector.load %arg2[%c0_4, %c0_5] : memref<64x48xf32, #tpu.memory_space<vmem>>, vector<64x48xf32>
    %cst = arith.constant dense<0.000000e+00> : vector<32x48xf32>
    %4 = tpu.matmul %2, %3, %cst {dimension_numbers = #tpu.dot_dimension_numbers<[1], [0], [0], [1], [0, 0, 1, 1], [], []>} : vector<32x64xf32>, vector<64x48xf32>, vector<32x48xf32> -> vector<32x48xf32>
    %5 = vector.extract_strided_slice %0 {offsets = [0, 0], sizes = [1, 48], strides = [1, 1]} : vector<6x48xf32> to vector<1x48xf32>
    %6 = vector.broadcast %5 : vector<1x48xf32> to vector<32x48xf32>
    %7 = arith.addf %4, %6 : vector<32x48xf32>
    %8 = vector.shape_cast %7 : vector<32x48xf32> to vector<2x16x48xf32>
    %cst_6 = arith.constant dense<0.000000e+00> : vector<2x48xf32>
    %9 = vector.multi_reduction <add>, %8, %cst_6 [1] : vector<2x16x48xf32> to vector<2x48xf32>
    %cst_7 = arith.constant 1.600000e+01 : f32
    %10 = vector.broadcast %cst_7 : f32 to vector<2x48xf32>
    %11 = arith.divf %9, %10 : vector<2x48xf32>
    %12 = arith.mulf %8, %8 : vector<2x16x48xf32>
    %cst_8 = arith.constant dense<0.000000e+00> : vector<2x48xf32>
    %13 = vector.multi_reduction <add>, %12, %cst_8 [1] : vector<2x16x48xf32> to vector<2x48xf32>
    %cst_9 = arith.constant 1.600000e+01 : f32
    %14 = vector.broadcast %cst_9 : f32 to vector<2x48xf32>
    %15 = arith.divf %13, %14 : vector<2x48xf32>
    %16 = vector.extract_strided_slice %11 {offsets = [0, 0], sizes = [2, 12], strides = [1, 1]} : vector<2x48xf32> to vector<2x12xf32>
    %17 = vector.extract_strided_slice %11 {offsets = [0, 12], sizes = [2, 12], strides = [1, 1]} : vector<2x48xf32> to vector<2x12xf32>
    %18 = arith.addf %16, %17 : vector<2x12xf32>
    %19 = vector.extract_strided_slice %11 {offsets = [0, 24], sizes = [2, 12], strides = [1, 1]} : vector<2x48xf32> to vector<2x12xf32>
    %20 = arith.addf %18, %19 : vector<2x12xf32>
    %21 = vector.extract_strided_slice %11 {offsets = [0, 36], sizes = [2, 12], strides = [1, 1]} : vector<2x48xf32> to vector<2x12xf32>
    %22 = arith.addf %20, %21 : vector<2x12xf32>
    %cst_10 = arith.constant 2.500000e-01 : f32
    %23 = vector.broadcast %cst_10 : f32 to vector<2x12xf32>
    %24 = arith.mulf %23, %22 : vector<2x12xf32>
    %25 = tpu.concatenate %24, %24, %24, %24 in 1 : vector<2x12xf32>, vector<2x12xf32>, vector<2x12xf32>, vector<2x12xf32> -> vector<2x48xf32>
    %26 = vector.extract_strided_slice %15 {offsets = [0, 0], sizes = [2, 12], strides = [1, 1]} : vector<2x48xf32> to vector<2x12xf32>
    %27 = vector.extract_strided_slice %15 {offsets = [0, 12], sizes = [2, 12], strides = [1, 1]} : vector<2x48xf32> to vector<2x12xf32>
    %28 = arith.addf %26, %27 : vector<2x12xf32>
    %29 = vector.extract_strided_slice %15 {offsets = [0, 24], sizes = [2, 12], strides = [1, 1]} : vector<2x48xf32> to vector<2x12xf32>
    %30 = arith.addf %28, %29 : vector<2x12xf32>
    %31 = vector.extract_strided_slice %15 {offsets = [0, 36], sizes = [2, 12], strides = [1, 1]} : vector<2x48xf32> to vector<2x12xf32>
    %32 = arith.addf %30, %31 : vector<2x12xf32>
    %cst_11 = arith.constant 2.500000e-01 : f32
    %33 = vector.broadcast %cst_11 : f32 to vector<2x12xf32>
    %34 = arith.mulf %33, %32 : vector<2x12xf32>
    %35 = tpu.concatenate %34, %34, %34, %34 in 1 : vector<2x12xf32>, vector<2x12xf32>, vector<2x12xf32>, vector<2x12xf32> -> vector<2x48xf32>
    %36 = arith.mulf %25, %25 : vector<2x48xf32>
    %37 = arith.subf %35, %36 : vector<2x48xf32>
    %cst_12 = arith.constant 0.000000e+00 : f32
    %38 = vector.broadcast %cst_12 : f32 to vector<2x48xf32>
    %39 = arith.maximumf %37, %38 : vector<2x48xf32>
    %40 = vector.extract_strided_slice %0 {offsets = [2, 0], sizes = [1, 48], strides = [1, 1]} : vector<6x48xf32> to vector<1x48xf32>
    %cst_13 = arith.constant 9.99999974E-6 : f32
    %41 = vector.broadcast %cst_13 : f32 to vector<2x48xf32>
    %42 = arith.addf %39, %41 : vector<2x48xf32>
    %43 = math.rsqrt %42 : vector<2x48xf32>
    %44 = vector.broadcast %40 : vector<1x48xf32> to vector<2x48xf32>
    %45 = arith.mulf %44, %43 : vector<2x48xf32>
    %46 = vector.extract_strided_slice %0 {offsets = [4, 0], sizes = [1, 48], strides = [1, 1]} : vector<6x48xf32> to vector<1x48xf32>
    %47 = vector.broadcast %46 : vector<1x48xf32> to vector<2x48xf32>
    %48 = arith.addf %45, %47 : vector<2x48xf32>
    %49 = vector.extract_strided_slice %0 {offsets = [3, 0], sizes = [1, 48], strides = [1, 1]} : vector<6x48xf32> to vector<1x48xf32>
    %50 = arith.mulf %25, %45 : vector<2x48xf32>
    %51 = vector.broadcast %49 : vector<1x48xf32> to vector<2x48xf32>
    %52 = arith.subf %51, %50 : vector<2x48xf32>
    %53 = vector.extract_strided_slice %0 {offsets = [5, 0], sizes = [1, 48], strides = [1, 1]} : vector<6x48xf32> to vector<1x48xf32>
    %54 = vector.broadcast %53 : vector<1x48xf32> to vector<2x48xf32>
    %55 = arith.addf %52, %54 : vector<2x48xf32>
    %56 = vector.shape_cast %48 : vector<2x48xf32> to vector<2x1x48xf32>
    %57 = vector.broadcast %56 : vector<2x1x48xf32> to vector<2x16x48xf32>
    %58 = arith.mulf %8, %57 : vector<2x16x48xf32>
    %59 = vector.shape_cast %55 : vector<2x48xf32> to vector<2x1x48xf32>
    %60 = vector.broadcast %59 : vector<2x1x48xf32> to vector<2x16x48xf32>
    %61 = arith.addf %58, %60 : vector<2x16x48xf32>
    %cst_14 = arith.constant 0.000000e+00 : f32
    %62 = vector.broadcast %cst_14 : f32 to vector<2x16x48xf32>
    %63 = arith.maximumf %61, %62 : vector<2x16x48xf32>
    %64 = vector.shape_cast %63 : vector<2x16x48xf32> to vector<32x48xf32>
    %c0_15 = arith.constant 0 : index
    %c0_16 = arith.constant 0 : index
    %65 = vector.load %arg3[%c0_15, %c0_16] : memref<48x48xf32, #tpu.memory_space<vmem>>, vector<48x48xf32>
    %cst_17 = arith.constant dense<0.000000e+00> : vector<32x48xf32>
    %66 = tpu.matmul %64, %65, %cst_17 {dimension_numbers = #tpu.dot_dimension_numbers<[1], [0], [0], [1], [0, 0, 1, 1], [], []>} : vector<32x48xf32>, vector<48x48xf32>, vector<32x48xf32> -> vector<32x48xf32>
    %67 = vector.extract_strided_slice %0 {offsets = [1, 0], sizes = [1, 48], strides = [1, 1]} : vector<6x48xf32> to vector<1x48xf32>
    %68 = vector.broadcast %67 : vector<1x48xf32> to vector<32x48xf32>
    %69 = arith.addf %66, %68 : vector<32x48xf32>
    %cst_18 = arith.constant 0.000000e+00 : f32
    %70 = vector.broadcast %cst_18 : f32 to vector<32x48xf32>
    %71 = arith.maximumf %69, %70 : vector<32x48xf32>
    %c0_19 = arith.constant 0 : index
    %c0_20 = arith.constant 0 : index
    %72 = vector.load %arg4[%c0_19, %c0_20] : memref<48x32xf32, #tpu.memory_space<vmem>>, vector<48x32xf32>
    %cst_21 = arith.constant dense<0.000000e+00> : vector<32x32xf32>
    %73 = tpu.matmul %71, %72, %cst_21 {dimension_numbers = #tpu.dot_dimension_numbers<[1], [0], [0], [1], [0, 0, 1, 1], [], []>} : vector<32x48xf32>, vector<48x32xf32>, vector<32x32xf32> -> vector<32x32xf32>
    %c0_22 = arith.constant 0 : index
    %c0_23 = arith.constant 0 : index
    %74 = vector.load %arg6[%c0_22, %c0_23] : memref<1x32xf32, #tpu.memory_space<vmem>>, vector<1x32xf32>
    %75 = vector.broadcast %74 : vector<1x32xf32> to vector<32x32xf32>
    %76 = arith.addf %73, %75 : vector<32x32xf32>
    %77 = vector.shape_cast %76 : vector<32x32xf32> to vector<2x16x32xf32>
    %c0_24 = arith.constant 0 : index
    %c0_25 = arith.constant 0 : index
    %c0_26 = arith.constant 0 : index
    %78 = vector.load %arg7[%c0_24, %c0_25, %c0_26] : memref<2x16x32xf32, #tpu.memory_space<vmem>>, vector<2x16x32xf32>
    tpu.vector_store %arg7[%c0_24, %c0_25, %c0_26], %77 {strides = array<i32>} : memref<2x16x32xf32, #tpu.memory_space<vmem>>, vector<2x16x32xf32>,
    return
  }
  func.func @transform_0(%arg0: i32) -> (i32, i32, i32) {
    %c0_i32 = arith.constant 0 : i32
    %c0_i32_0 = arith.constant 0 : i32
    %c0_i32_1 = arith.constant 0 : i32
    return %arg0, %c0_i32, %c0_i32_0 : i32, i32, i32
  }
  func.func @transform_1(%arg0: i32) -> (i32, i32) {
    %c0_i32 = arith.constant 0 : i32
    %c0_i32_0 = arith.constant 0 : i32
    %c0_i32_1 = arith.constant 0 : i32
    return %c0_i32, %c0_i32_0 : i32, i32
  }
  func.func @transform_2(%arg0: i32) -> (i32, i32) {
    %c0_i32 = arith.constant 0 : i32
    %c0_i32_0 = arith.constant 0 : i32
    %c0_i32_1 = arith.constant 0 : i32
    return %c0_i32, %c0_i32_0 : i32, i32
  }
  func.func @transform_3(%arg0: i32) -> (i32, i32) {
    %c0_i32 = arith.constant 0 : i32
    %c0_i32_0 = arith.constant 0 : i32
    %c0_i32_1 = arith.constant 0 : i32
    return %c0_i32, %c0_i32_0 : i32, i32
  }
  func.func @transform_4(%arg0: i32) -> (i32, i32) {
    %c0_i32 = arith.constant 0 : i32
    %c0_i32_0 = arith.constant 0 : i32
    %c0_i32_1 = arith.constant 0 : i32
    return %c0_i32, %c0_i32_0 : i32, i32
  }
  func.func @transform_5(%arg0: i32) -> (i32, i32) {
    %c0_i32 = arith.constant 0 : i32
    %c0_i32_0 = arith.constant 0 : i32
    %c0_i32_1 = arith.constant 0 : i32
    return %c0_i32, %c0_i32_0 : i32, i32
  }
  func.func @transform_6(%arg0: i32) -> (i32, i32, i32) {
    %c0_i32 = arith.constant 0 : i32
    %c0_i32_0 = arith.constant 0 : i32
    %c0_i32_1 = arith.constant 0 : i32
    return %arg0, %c0_i32, %c0_i32_0 : i32, i32, i32
  }
}

</mosaic_0001>

<llo_original>
// kernel: tile.28
$region0: #{tile.28}
  #allocation0 [shape = 's32[1]{0}', space=sflag, size = 0x4, scoped, tag = 'scoped memory for tile.28']
  %s0 = inlined_call_operand.vmem [shape: f32[12], index: 0, kind: input, shape index: {}]
  %s1 = inlined_call_operand.vmem [shape: f32[4,12], index: 1, kind: output, shape index: {}]
  // Predicated region
  $region2: #{tile.28} parent=0 // pred_check
    _
  $region3: #{tile.28} parent=0 // pred_check_branch
    %3 = sbr.rel (0) target = $region5
  $region4: #{tile.28} parent=0 // pred_region
    _
  $region5: #{tile.28} parent=0 // pred_fallthru
    _
  %v4 = vld [vmem:[%s0] ss:$0 sm:$0xff]
  %5 = vst [vmem:[%s1] sm:$0xf] %v4

// kernel: tile.45
$region0: #{tile.45}
  %s0 = inlined_call_operand.vmem [shape: f32[4,12], index: 0, kind: input, shape index: {}]
  %s1 = inlined_call_operand.vmem [shape: f32[1,48], index: 1, kind: output, shape index: {}]
  $region1: #{tile.45} parent=0
    #allocation0 [shape = 'u8[4096]{0}', space=vmem, size = 0x1000, scoped, tag = 'scoped mem for output reshape']
    #allocation1 [shape = 'u8[4096]{0}', space=vmem, size = 0x1000, scoped, tag = 'scoped mem for input reshape']
    %s3 = ssub.s32 16, 1
    %v4 = vld [vmem:[%s0] sm:%s3]
    %5 = vst [vmem:[#allocation1] sm:%s3] %v4
    %v6 = vld [vmem:[#allocation1] sm:$0x1]
    %vm7 = vcmask 97280
    %8 = vst.msk [vmem:[#allocation0] sm:$0x1] %vm7, %v6
    %s9 = scalar_lea.vmem [#allocation1], 3
    %v10 = vld [vmem:[%s9] sm:$0x1]
    %11 = vrot.lane.b32.xlu0 %v10, 36
    %v12 = vpop.permute.xlu0 %11
    %vm13 = vcmask 392480
    %14 = vst.msk [vmem:[#allocation0] sm:$0x1] %vm13, %v12
    %s15 = scalar_lea.vmem [#allocation1], 2
    %v16 = vld [vmem:[%s15] sm:$0x1]
    %17 = vrot.lane.b32.xlu0 %v16, 24
    %v18 = vpop.permute.xlu0 %17
    %vm19 = vcmask 294080
    %20 = vst.msk [vmem:[#allocation0] sm:$0x1] %vm19, %v18
    %s21 = scalar_lea.vmem [#allocation1], 1
    %v22 = vld [vmem:[%s21] sm:$0x1]
    %23 = vrot.lane.b32.xlu0 %v22, 12
    %v24 = vpop.permute.xlu0 %23
    %vm25 = vcmask 195680
    %26 = vst.msk [vmem:[#allocation0] sm:$0x1] %vm25, %v24
    %s28 = ssub.s32 2, 1
    %v29 = vld [vmem:[#allocation0] sm:%s28]
    %s31 = ssub.s32 2, 1
    %32 = vst [vmem:[%s1] sm:%s31] %v29

// kernel: shadow_feature_extraction.1
$region0: #{shadow_feature_extraction.1}
  #allocation0 [shape = 'u32[]', space=smem, size = 0x4, offset = 0x4, fixed_abs, tag = 'smem constant byte address 0x4 - core index']
  #allocation1 [shape = 'u32[72,128]{1,0:T(1,128)}', space=vmem, size = 0x9000, scoped, tag = 'internal scratch']
  %s0 = inlined_call_operand.vmem [shape: f32[2,16,64], index: 0, kind: input, shape index: {}]
  %s1 = inlined_call_operand.vmem [shape: f32[64,48], index: 1, kind: input, shape index: {}]
  %s2 = inlined_call_operand.vmem [shape: f32[48,48], index: 2, kind: input, shape index: {}]
  %s3 = inlined_call_operand.vmem [shape: f32[48,32], index: 3, kind: input, shape index: {}]
  %s4 = inlined_call_operand.vmem [shape: f32[6,48], index: 4, kind: input, shape index: {}]
  %s5 = inlined_call_operand.vmem [shape: f32[1,32], index: 5, kind: input, shape index: {}]
  %s6 = inlined_call_operand.hbm [shape: f32[2,16,32], index: 6, kind: output, shape index: {}]
  %s7 = sld [smem:[#allocation0]]
  $region34: #{shadow_feature_extraction.1} parent=0
    _
  %s9 = ssub.s32 1, %s7
  %s10 = scalar_select 0, %s9, %s7
  $region1: #{shadow_feature_extraction.1} parent=0
    #allocation2 [shape = 'u8[16384]{0}', space=vmem, size = 0x4000, scoped, tag = 'output window, operand 0, single buffered']
    #allocation3 [shape = 's32[1]{0}', space=sflag, size = 0x4, scoped, tag = 'scoped memory for shadow_feature_extraction.1']
    %11 = vsyncpa [#allocation3], 0
    // Predicated region
    $region2: #{shadow_feature_extraction.1} parent=1 // pred_check
      _
    $region3: #{shadow_feature_extraction.1} parent=1 // pred_check_branch
      %13 = sbr.rel (0) target = $region5
    $region4: #{shadow_feature_extraction.1} parent=1 // pred_region
      _
    $region5: #{shadow_feature_extraction.1} parent=1 // pred_fallthru
      _
    // Predicated region
    $region6: #{shadow_feature_extraction.1} parent=1 // pred_check
      _
    $region7: #{shadow_feature_extraction.1} parent=1 // pred_check_branch
      %15 = sbr.rel (0) target = $region9
    $region8: #{shadow_feature_extraction.1} parent=1 // pred_region
      _
    $region9: #{shadow_feature_extraction.1} parent=1 // pred_fallthru
      _
    // Predicated region
    $region10: #{shadow_feature_extraction.1} parent=1 // pred_check
      _
    $region11: #{shadow_feature_extraction.1} parent=1 // pred_check_branch
      %17 = sbr.rel (0) target = $region13
    $region12: #{shadow_feature_extraction.1} parent=1 // pred_region
      _
    $region13: #{shadow_feature_extraction.1} parent=1 // pred_fallthru
      _
    // Predicated region
    $region14: #{shadow_feature_extraction.1} parent=1 // pred_check
      _
    $region15: #{shadow_feature_extraction.1} parent=1 // pred_check_branch
      %19 = sbr.rel (0) target = $region17
    $region16: #{shadow_feature_extraction.1} parent=1 // pred_region
      _
    $region17: #{shadow_feature_extraction.1} parent=1 // pred_fallthru
      _
    // Predicated region
    $region18: #{shadow_feature_extraction.1} parent=1 // pred_check
      _
    $region19: #{shadow_feature_extraction.1} parent=1 // pred_check_branch
      %21 = sbr.rel (0) target = $region21
    $region20: #{shadow_feature_extraction.1} parent=1 // pred_region
      _
    $region21: #{shadow_feature_extraction.1} parent=1 // pred_fallthru
      _
    // Predicated region
    $region22: #{shadow_feature_extraction.1} parent=1 // pred_check
      _
    $region23: #{shadow_feature_extraction.1} parent=1 // pred_check_branch
      %23 = sbr.rel (0) target = $region25
    $region24: #{shadow_feature_extraction.1} parent=1 // pred_region
      _
    $region25: #{shadow_feature_extraction.1} parent=1 // pred_fallthru
      _
    %v24 = vld [vmem:[%s4] sm:$0x3f]
    %v25 = vld [vmem:[%s0] sm:$0xff]
    %v26 = vld [vmem:[%s0 + $0x8] sm:$0xff]
    %v27 = vld [vmem:[%s0 + $0x10] sm:$0xff]
    %v28 = vld [vmem:[%s0 + $0x18] sm:$0xff]
    %v29 = vld [vmem:[%s1] sm:$0xff]
    %v30 = vld [vmem:[%s1 + $0x8] sm:$0xff]
    %v31 = vld [vmem:[%s1 + $0x10] sm:$0xff]
    %v32 = vld [vmem:[%s1 + $0x18] sm:$0xff]
    %v33 = vld [vmem:[%s1 + $0x20] sm:$0xff]
    %v34 = vld [vmem:[%s1 + $0x28] sm:$0xff]
    %v35 = vld [vmem:[%s1 + $0x30] sm:$0xff]
    %v36 = vld [vmem:[%s1 + $0x38] sm:$0xff]
    %v37 = vperm.slane %v24, 0
    %vm38 = vcmask 523264
    %v40 = vsel %vm38, %v25, 0
    %v43 = vsel %vm38, %v26, 0
    %v46 = vsel %vm38, %v27, 0
    %v49 = vsel %vm38, %v28, 0
    %51 = vmatpush.msra.mxu0 0.0
    %52 = vmatpush.msra.mxu0 0.0
    %53 = vmatpush.msra.mxu0 0.0
    %54 = vmatpush.msra.mxu0 0.0
    %55 = vmatpush.msra.mxu0 0.0
    %56 = vmatpush.msra.mxu0 0.0
    %57 = vmatpush.msra.mxu0 0.0
    %58 = vmatpush.msra.mxu0 0.0
    %59 = vmatpush.msra.mxu0 %v36
    %60 = vmatpush.msra.mxu0 %v35
    %61 = vmatpush.msra.mxu0 %v34
    %62 = vmatpush.msra.mxu0 %v33
    %63 = vmatpush.msra.mxu0 %v32
    %64 = vmatpush.msra.mxu0 %v31
    %65 = vmatpush.msra.mxu0 %v30
    %66 = vmatpush.msra.mxu0 %v29
    %67 = vmatmul.f32.gmra.mxu0 %v40
    %v68 = vpop.f32.mrf.mxu0
    %v69 = vadd.f32 %v37, %v68
    %70 = vmatmul.f32.gmra.mxu0 %v43
    %v71 = vpop.f32.mrf.mxu0
    %v72 = vadd.f32 %v37, %v71
    %73 = vmatmul.f32.gmra.mxu0 %v46
    %v74 = vpop.f32.mrf.mxu0
    %v75 = vadd.f32 %v37, %v74
    %76 = vmatmul.f32.gmra.mxu0 %v49
    %v77 = vpop.f32.mrf.mxu0
    %v78 = vadd.f32 %v37, %v77
    %79 = vdwg.mxu0
    %vm80 = vcmask 392192
    %v81 = vsel %vm80, %v69, 0.0
    %v82 = vsel %vm80, %v72, 0.0
    %v83 = vadd.f32 %v81, %v82
    %v84 = vrot.slane %v83, 4
    %v85 = vadd.f32 %v83, %v84
    %v86 = vrot.slane %v85, 2
    %v87 = vadd.f32 %v85, %v86
    %v88 = vrot.slane %v87, 1
    %v89 = vadd.f32 %v87, %v88
    %v90 = vsel %vm80, %v75, 0.0
    %v91 = vsel %vm80, %v78, 0.0
    %v92 = vadd.f32 %v90, %v91
    %v93 = vrot.slane %v92, 4
    %v94 = vadd.f32 %v92, %v93
    %v95 = vrot.slane %v94, 2
    %v96 = vadd.f32 %v94, %v95
    %v97 = vrot.slane %v96, 1
    %v98 = vadd.f32 %v96, %v97
    %v99 = vrcp.pop 16.0
    %v100 = vmul.f32 16.0, %v99
    %v101 = vsub.f32 1.0, %v100
    %v102 = vmul.f32 %v99, %v101
    %v103 = vadd.f32 %v99, %v102
    %vm104 = vweird.f32 %v99
    %v105 = vsel %vm104, %v99, %v103
    %v106 = vmul.f32 %v89, %v105
    %v107 = vmul.f32 %v98, %v105
    %v108 = vmul.f32 %v69, %v69
    %v109 = vmul.f32 %v72, %v72
    %v110 = vmul.f32 %v75, %v75
    %v111 = vmul.f32 %v78, %v78
    %v112 = vsel %vm80, %v108, 0.0
    %v113 = vsel %vm80, %v109, 0.0
    %v114 = vadd.f32 %v112, %v113
    %v115 = vrot.slane %v114, 4
    %v116 = vadd.f32 %v114, %v115
    %v117 = vrot.slane %v116, 2
    %v118 = vadd.f32 %v116, %v117
    %v119 = vrot.slane %v118, 1
    %v120 = vadd.f32 %v118, %v119
    %v121 = vsel %vm80, %v110, 0.0
    %v122 = vsel %vm80, %v111, 0.0
    %v123 = vadd.f32 %v121, %v122
    %v124 = vrot.slane %v123, 4
    %v125 = vadd.f32 %v123, %v124
    %v126 = vrot.slane %v125, 2
    %v127 = vadd.f32 %v125, %v126
    %v128 = vrot.slane %v127, 1
    %v129 = vadd.f32 %v127, %v128
    %v130 = vmul.f32 %v120, %v105
    %v131 = vmul.f32 %v129, %v105
    %134 = vrot.lane.b32.xlu0 %v106, 116
    %v135 = vpop.permute.xlu0 %134
    %136 = vrot.lane.b32.xlu0 %v107, 116
    %v137 = vpop.permute.xlu0 %136
    %v140 = vadd.f32 %v106, %v135
    %v141 = vadd.f32 %v107, %v137
    %142 = vrot.lane.b32.xlu0 %v106, 104
    %v143 = vpop.permute.xlu0 %142
    %144 = vrot.lane.b32.xlu0 %v107, 104
    %v145 = vpop.permute.xlu0 %144
    %v148 = vadd.f32 %v140, %v143
    %v149 = vadd.f32 %v141, %v145
    %150 = vrot.lane.b32.xlu0 %v106, 92
    %v151 = vpop.permute.xlu0 %150
    %152 = vrot.lane.b32.xlu0 %v107, 92
    %v153 = vpop.permute.xlu0 %152
    %v156 = vadd.f32 %v148, %v151
    %v157 = vadd.f32 %v149, %v153
    %v158 = vmul.f32 %v156, 0.25
    %v159 = vmul.f32 %v157, 0.25
    %v162 = vrot.slane %v159, 7
    %vm163 = vcmask 1041409
    %v164 = vsel %vm163, %v162, %v158
    %166 = vrot.lane.b32.xlu0 %v164, 12
    %v167 = vpop.permute.xlu0 %166
    %169 = vrot.lane.b32.xlu0 %v164, 24
    %v170 = vpop.permute.xlu0 %169
    %172 = vrot.lane.b32.xlu0 %v164, 36
    %v173 = vpop.permute.xlu0 %172
    %vm175 = vcmask 97280
    %v176 = vsel %vm175, %v164, %v167
    %vm177 = vcmask 195584
    %v178 = vsel %vm177, %v176, %v170
    %vm179 = vcmask 293888
    %v180 = vsel %vm179, %v178, %v173
    %183 = vrot.lane.b32.xlu0 %v130, 116
    %v184 = vpop.permute.xlu0 %183
    %185 = vrot.lane.b32.xlu0 %v131, 116
    %v186 = vpop.permute.xlu0 %185
    %v189 = vadd.f32 %v130, %v184
    %v190 = vadd.f32 %v131, %v186
    %191 = vrot.lane.b32.xlu0 %v130, 104
    %v192 = vpop.permute.xlu0 %191
    %193 = vrot.lane.b32.xlu0 %v131, 104
    %v194 = vpop.permute.xlu0 %193
    %v197 = vadd.f32 %v189, %v192
    %v198 = vadd.f32 %v190, %v194
    %199 = vrot.lane.b32.xlu0 %v130, 92
    %v200 = vpop.permute.xlu0 %199
    %201 = vrot.lane.b32.xlu0 %v131, 92
    %v202 = vpop.permute.xlu0 %201
    %v205 = vadd.f32 %v197, %v200
    %v206 = vadd.f32 %v198, %v202
    %v207 = vmul.f32 %v205, 0.25
    %v208 = vmul.f32 %v206, 0.25
    %v211 = vrot.slane %v208, 7
    %v212 = vsel %vm163, %v211, %v207
    %214 = vrot.lane.b32.xlu0 %v212, 12
    %v215 = vpop.permute.xlu0 %214
    %217 = vrot.lane.b32.xlu0 %v212, 24
    %v218 = vpop.permute.xlu0 %217
    %220 = vrot.lane.b32.xlu0 %v212, 36
    %v221 = vpop.permute.xlu0 %220
    %v223 = vsel %vm175, %v212, %v215
    %v224 = vsel %vm177, %v223, %v218
    %v225 = vsel %vm179, %v224, %v221
    %v226 = vmul.f32 %v180, %v180
    %v227 = vsub.f32 %v225, %v226
    %v228 = vmax.f32 %v227, 0.0
    %v229 = vadd.f32 %v228, 1e-05
    %v230 = vrsqrt.pop %v229
    %v231 = vmul.f32 %v230, %v229
    %v232 = vmul.f32 %v231, %v230
    %v233 = vmul.f32 0.5, %v232
    %v234 = vsub.f32 1.5, %v233
    %v235 = vmul.f32 %v230, %v234
    %vm236 = vweird.f32 %v229
    %vm237 = vweird.f32 %v230
    %vm238 = vmor %vm236, %vm237
    %v239 = vsel %vm238, %v230, %v235
    %v240 = vperm.slane %v24, 2
    %v241 = vmul.f32 %v240, %v239
    %v242 = vperm.slane %v24, 4
    %v243 = vadd.f32 %v241, %v242
    %v244 = vmul.f32 %v180, %v241
    %v245 = vperm.slane %v24, 3
    %v246 = vsub.f32 %v245, %v244
    %v247 = vperm.slane %v24, 5
    %v248 = vadd.f32 %v246, %v247
    %v250 = vrot.slane %v243, 1
    %v251 = vperm.slane %v243, 0
    %v252 = vperm.slane %v250, 0
    %v255 = vmul.f32 %v69, %v251
    %v256 = vmul.f32 %v72, %v251
    %v257 = vmul.f32 %v75, %v252
    %v258 = vmul.f32 %v78, %v252
    %v260 = vrot.slane %v248, 1
    %v261 = vperm.slane %v248, 0
    %v262 = vperm.slane %v260, 0
    %v265 = vadd.f32 %v255, %v261
    %v266 = vadd.f32 %v256, %v261
    %v267 = vadd.f32 %v257, %v262
    %v268 = vadd.f32 %v258, %v262
    %v269 = vmax.f32 %v265, 0.0
    %v270 = vmax.f32 %v266, 0.0
    %v271 = vmax.f32 %v267, 0.0
    %v272 = vmax.f32 %v268, 0.0
    %v273 = vld [vmem:[%s2] sm:$0xff]
    %v274 = vld [vmem:[%s2 + $0x8] sm:$0xff]
    %v275 = vld [vmem:[%s2 + $0x10] sm:$0xff]
    %v276 = vld [vmem:[%s2 + $0x18] sm:$0xff]
    %v277 = vld [vmem:[%s2 + $0x20] sm:$0xff]
    %v278 = vld [vmem:[%s2 + $0x28] sm:$0xff]
    %v279 = vperm.slane %v24, 1
    %v281 = vsel %vm80, %v269, 0
    %v284 = vsel %vm80, %v270, 0
    %v287 = vsel %vm80, %v271, 0
    %v290 = vsel %vm80, %v272, 0
    %292 = vmatpush.msra.mxu0 0.0
    %293 = vmatpush.msra.mxu0 0.0
    %294 = vmatpush.msra.mxu0 0.0
    %295 = vmatpush.msra.mxu0 0.0
    %296 = vmatpush.msra.mxu0 0.0
    %297 = vmatpush.msra.mxu0 0.0
    %298 = vmatpush.msra.mxu0 0.0
    %299 = vmatpush.msra.mxu0 0.0
    %300 = vmatpush.msra.mxu0 0.0
    %301 = vmatpush.msra.mxu0 0.0
    %302 = vmatpush.msra.mxu0 %v278
    %303 = vmatpush.msra.mxu0 %v277
    %304 = vmatpush.msra.mxu0 %v276
    %305 = vmatpush.msra.mxu0 %v275
    %306 = vmatpush.msra.mxu0 %v274
    %307 = vmatpush.msra.mxu0 %v273
    %308 = vmatmul.f32.gmra.mxu0 %v281
    %v309 = vpop.f32.mrf.mxu0
    %v310 = vadd.f32 %v279, %v309
    %311 = vmatmul.f32.gmra.mxu0 %v284
    %v312 = vpop.f32.mrf.mxu0
    %v313 = vadd.f32 %v279, %v312
    %314 = vmatmul.f32.gmra.mxu0 %v287
    %v315 = vpop.f32.mrf.mxu0
    %v316 = vadd.f32 %v279, %v315
    %317 = vmatmul.f32.gmra.mxu0 %v290
    %v318 = vpop.f32.mrf.mxu0
    %v319 = vadd.f32 %v279, %v318
    %320 = vdwg.mxu0
    %v321 = vmax.f32 %v310, 0.0
    %v322 = vmax.f32 %v313, 0.0
    %v323 = vmax.f32 %v316, 0.0
    %v324 = vmax.f32 %v319, 0.0
    %v325 = vld [vmem:[%s3] sm:$0xff]
    %v326 = vld [vmem:[%s3 + $0x8] sm:$0xff]
    %v327 = vld [vmem:[%s3 + $0x10] sm:$0xff]
    %v328 = vld [vmem:[%s3 + $0x18] sm:$0xff]
    %v329 = vld [vmem:[%s3 + $0x20] sm:$0xff]
    %v330 = vld [vmem:[%s3 + $0x28] sm:$0xff]
    %v331 = vld [vmem:[%s5] sm:$0x1]
    %v333 = vperm.slane %v331, 0
    %v336 = vsel %vm80, %v321, 0
    %v339 = vsel %vm80, %v322, 0
    %v342 = vsel %vm80, %v323, 0
    %v345 = vsel %vm80, %v324, 0
    %347 = vmatpush.msra.mxu0 0.0
    %348 = vmatpush.msra.mxu0 0.0
    %349 = vmatpush.msra.mxu0 0.0
    %350 = vmatpush.msra.mxu0 0.0
    %351 = vmatpush.msra.mxu0 0.0
    %352 = vmatpush.msra.mxu0 0.0
    %353 = vmatpush.msra.mxu0 0.0
    %354 = vmatpush.msra.mxu0 0.0
    %355 = vmatpush.msra.mxu0 0.0
    %356 = vmatpush.msra.mxu0 0.0
    %357 = vmatpush.msra.mxu0 %v330
    %358 = vmatpush.msra.mxu0 %v329
    %359 = vmatpush.msra.mxu0 %v328
    %360 = vmatpush.msra.mxu0 %v327
    %361 = vmatpush.msra.mxu0 %v326
    %362 = vmatpush.msra.mxu0 %v325
    %363 = vmatmul.f32.gmra.mxu0 %v336
    %v364 = vpop.f32.mrf.mxu0
    %v365 = vadd.f32 %v333, %v364
    %366 = vmatmul.f32.gmra.mxu0 %v339
    %v367 = vpop.f32.mrf.mxu0
    %v368 = vadd.f32 %v333, %v367
    %369 = vmatmul.f32.gmra.mxu0 %v342
    %v370 = vpop.f32.mrf.mxu0
    %v371 = vadd.f32 %v333, %v370
    %372 = vmatmul.f32.gmra.mxu0 %v345
    %v373 = vpop.f32.mrf.mxu0
    %v374 = vadd.f32 %v333, %v373
    %375 = vdwg.mxu0
    %vm376 = vcmask 261120
    %377 = vst.msk [vmem:[#allocation2] sm:$0xff] %vm376, %v365
    %378 = vst.msk [vmem:[#allocation2 + $0x8] sm:$0xff] %vm376, %v368
    %379 = vst.msk [vmem:[#allocation2 + $0x10] sm:$0xff] %vm376, %v371
    %380 = vst.msk [vmem:[#allocation2 + $0x18] sm:$0xff] %vm376, %v374
    // Predicated region
    $region26: #{shadow_feature_extraction.1} parent=1 // pred_check
      _
    $region27: #{shadow_feature_extraction.1} parent=1 // pred_check_branch
      %382 = sbr.rel (0) target = $region29
    $region28: #{shadow_feature_extraction.1} parent=1 // pred_region
      %384 = vsyncadd [#allocation3], 0
      %s385 = sshll.u32 [#allocation2], 4
      %s386 = int_to_ptr.vmem [resolvable:$true] %s385
      %s387 = sshll.u32 %s6, 4
      %s388 = int_to_ptr.hbm [resolvable:$true] %s387
      %393 = dma.vmem_to_hbm [thread:$0]  %s386, 512, %s388, [#allocation3], 128, 128, 8
    $region29: #{shadow_feature_extraction.1} parent=1 // pred_fallthru
      _
    // Predicated region
    $region30: #{shadow_feature_extraction.1} parent=1 // pred_check
      _
    $region31: #{shadow_feature_extraction.1} parent=1 // pred_check_branch
      %395 = sbr.rel (0) target = $region33
    $region32: #{shadow_feature_extraction.1} parent=1 // pred_region
      %397 = dma.done [#allocation3], 512
    $region33: #{shadow_feature_extraction.1} parent=1 // pred_fallthru
      _
    %398 = vsyncpa [#allocation3], 1

</llo_original>
